<compile_context>
chip_gen: v5e
topology: v5e:2x2
jax: 0.10.0
libtpu: 0.0.40
codegen_flags: <defaults>
</compile_context>

<pallas_src>
import functools

import numpy as np
import jax
import jax.numpy as jnp
from jax.experimental import pallas as pl
from jax.experimental.pallas import tpu as pltpu


def _round_up(x, m):
    return -(-x // m) * m


def _phys_bytes(shape, itemsize):
    """Physical VMEM footprint of a block: last dim padded to 128 lanes,
    second-to-last to 8 sublanes (f32 tiling; conservative for narrower dtypes)."""
    s = list(shape)
    s[-1] = _round_up(s[-1], 128)
    if len(s) >= 2:
        s[-2] = _round_up(s[-2], 8)
    n = 1
    for d in s:
        n *= d
    return n * itemsize


def _shortcut_kernel(x_ref, sel_ref, o_ref, *, pad):
    # x_ref:   (TN, C, H*W)      NCHW image(s), spatial dims folded onto lanes
    # sel_ref: (H*W, H2*W2)      constant 0/1 subsample-selection matrix
    # o_ref:   (TN, C + 2*pad, H2*W2)
    tn, c, hw = x_ref.shape
    hw2 = o_ref.shape[-1]

    # Stride-2 H/W subsample as an exact selection matmul on the MXU.
    # (TN, C, HW) -> (TN*C, HW) is a free leading-dim merge (C % 8 == 0, or TN == 1;
    # the wrapper guarantees one of the two).
    sub = jnp.dot(x_ref[...].reshape(tn * c, hw), sel_ref[...],
                  precision=jax.lax.Precision.HIGHEST,
                  preferred_element_type=jnp.float32)
    sub = sub.reshape(tn, c, hw2).astype(o_ref.dtype)

    if pad > 0:
        # Channel zero-pad: zero-init then store the data rows.  Equivalent in
        # cost to an in-register concat; stores are lane-dense either way.
        o_ref[...] = jnp.zeros_like(o_ref)
        o_ref[:, pad:pad + c, :] = sub
    else:
        o_ref[...] = sub


def lambda_layer_shortcut(x_nchw, planes, *, vmem_block_budget_bytes=2 * 1024 * 1024):
    """Pallas equivalent of LambdaLayer(option-A shortcut).forward.

    x_nchw: (N, C, H, W) array.
    planes: target plane count; channel zero-pad is planes // 4 on each side.
    returns: (N, C + 2*(planes // 4), ceil(H/2), ceil(W/2)), NCHW.
    """
    N, C, H, W = x_nchw.shape
    pad = planes // 4
    C_out = C + 2 * pad
    H2, W2 = (H + 1) // 2, (W + 1) // 2
    HW, HW2 = H * W, H2 * W2
    dtype = x_nchw.dtype
    itemsize = jnp.dtype(dtype).itemsize

    # Constant 0/1 selection matrix: column (h2*W2 + w2) picks source element
    # (2*h2)*W + (2*w2).  Built host-side (numpy) so it is a compile-time
    # constant; odd H/W are handled with no padding at all.
    hw_idx = np.arange(HW)
    h, w = hw_idx // W, hw_idx % W
    keep = (h % 2 == 0) & (w % 2 == 0)
    dst = (h // 2) * W2 + (w // 2)
    sel_np = np.zeros((HW, HW2), dtype=np.float32)
    sel_np[hw_idx[keep], dst[keep]] = 1.0
    sel = jnp.asarray(sel_np, dtype=dtype)

    # Free (layout-preserving) reshape: spatial dims folded onto the lane axis.
    x = x_nchw.reshape(N, C, HW)

    # Batch tile from a physical-VMEM budget: padded bytes, both blocks
    # double-buffered; keep >= 2 grid steps when N >= 2 (v7x megacore).
    in_img = _phys_bytes((1, C, HW), itemsize)
    out_img = _phys_bytes((1, C_out, HW2), itemsize)
    tn = max(1, vmem_block_budget_bytes // (2 * (in_img + out_img)))
    tn = min(tn, max(1, N // 2))
    if C % 8:
        tn = 1                      # keeps the in-kernel leading-dim merge free
    while N % tn:
        tn -= 1

    vmem_need = 2 * tn * (in_img + out_img) + 2 * _phys_bytes((HW, HW2), itemsize)
    vmem_limit = int(min(max(2 * vmem_need, 4 << 20), 64 << 20))

    bytes_accessed = (N * C * HW + N * C_out * HW2 + HW * HW2) * itemsize
    cost = pl.CostEstimate(flops=2 * N * C * HW * HW2, transcendentals=0,
                           bytes_accessed=bytes_accessed)

    out = pl.pallas_call(
        functools.partial(_shortcut_kernel, pad=pad),
        out_shape=jax.ShapeDtypeStruct((N, C_out, HW2), dtype),
        grid=(N // tn,),
        in_specs=[
            pl.BlockSpec((tn, C, HW), lambda n: (n, 0, 0)),
            pl.BlockSpec((HW, HW2), lambda n: (0, 0)),   # constant index -> fetched once
        ],
        out_specs=pl.BlockSpec((tn, C_out, HW2), lambda n: (n, 0, 0)),
        compiler_params=pltpu.CompilerParams(
            dimension_semantics=("parallel",),
            vmem_limit_bytes=vmem_limit),
        cost_estimate=cost,
    )(x, sel)

    # Free reshape back to the NCHW output shape (splits the trailing dim).
    return out.reshape(N, C_out, H2, W2)


if __name__ == "__main__":
    key = jax.random.PRNGKey(0)
    N, C, H, W = 2, 4, 16, 16
    planes = 8  # typical option-A shortcut: doubling channels, pad = planes // 4 = 2

    x = jax.random.normal(key, (N, C, H, W), dtype=jnp.float32)

    out = jax.block_until_ready(lambda_layer_shortcut(x, planes))

    # Pure-JAX reference of the PyTorch lambda:
    # F.pad(x[:, :, ::2, ::2], (0,0, 0,0, planes//4, planes//4))
    pad = planes // 4
    ref = jnp.pad(x[:, :, ::2, ::2],
                  ((0, 0), (pad, pad), (0, 0), (0, 0)),
                  mode="constant", constant_values=0.0)

    assert out.shape == ref.shape, (out.shape, ref.shape)
    assert jnp.allclose(out, ref), "mismatch vs reference"

    print("KERNEL_OK")
</pallas_src>

<mosaic_0001>
module attributes {stable_mosaic.version = 11 : i64} {
  func.func @_shortcut_kernel(%arg0: i32, %arg1: memref<1x4x256xf32, #tpu.memory_space<vmem>>, %arg2: memref<256x64xf32, #tpu.memory_space<vmem>>, %arg3: memref<1x8x64xf32, #tpu.memory_space<vmem>>) attributes {dimension_semantics = [#tpu.dimension_semantics<parallel>], iteration_bounds = array<i64: 2>, scalar_prefetch = 0 : i64, scratch_operands = 0 : i64, tpu.core_type = #tpu.core_type<tc>, window_params = [{transform_indices = @transform_0, window_bounds = array<i64: 1, 4, 256>}, {pipeline_mode = #tpu.pipeline_mode<synchronous>, transform_indices = @transform_1, window_bounds = array<i64: 256, 64>}, {transform_indices = @transform_2, window_bounds = array<i64: 1, 8, 64>}]} {
    %c0 = arith.constant 0 : index
    %c0_0 = arith.constant 0 : index
    %c0_1 = arith.constant 0 : index
    %0 = vector.load %arg1[%c0, %c0_0, %c0_1] : memref<1x4x256xf32, #tpu.memory_space<vmem>>, vector<1x4x256xf32>
    %1 = vector.shape_cast %0 : vector<1x4x256xf32> to vector<4x256xf32>
    %c0_2 = arith.constant 0 : index
    %c0_3 = arith.constant 0 : index
    %2 = vector.load %arg2[%c0_2, %c0_3] : memref<256x64xf32, #tpu.memory_space<vmem>>, vector<256x64xf32>
    %cst = arith.constant dense<0.000000e+00> : vector<4x64xf32>
    %3 = tpu.matmul %1, %2, %cst {dimension_numbers = #tpu.dot_dimension_numbers<[1], [0], [0], [1], [0, 0, 1, 1], [], []>, precision = #tpu.contract_precision<fp32>} : vector<4x256xf32>, vector<256x64xf32>, vector<4x64xf32> -> vector<4x64xf32>
    %4 = vector.shape_cast %3 : vector<4x64xf32> to vector<1x4x64xf32>
    %cst_4 = arith.constant 0.000000e+00 : f32
    %5 = vector.broadcast %cst_4 : f32 to vector<1x8x64xf32>
    %c0_5 = arith.constant 0 : index
    %c0_6 = arith.constant 0 : index
    %c0_7 = arith.constant 0 : index
    %6 = vector.load %arg3[%c0_5, %c0_6, %c0_7] : memref<1x8x64xf32, #tpu.memory_space<vmem>>, vector<1x8x64xf32>
    tpu.vector_store %arg3[%c0_5, %c0_6, %c0_7], %5 {strides = array<i32>} : memref<1x8x64xf32, #tpu.memory_space<vmem>>, vector<1x8x64xf32>,
    %c0_8 = arith.constant 0 : index
    %c2 = arith.constant 2 : index
    %c0_9 = arith.constant 0 : index
    %7 = vector.load %arg3[%c0_8, %c2, %c0_9] : memref<1x8x64xf32, #tpu.memory_space<vmem>>, vector<1x4x64xf32>
    tpu.vector_store %arg3[%c0_8, %c2, %c0_9], %4 {strides = array<i32>} : memref<1x8x64xf32, #tpu.memory_space<vmem>>, vector<1x4x64xf32>,
    return
  }
  func.func @transform_0(%arg0: i32) -> (i32, i32, i32) {
    %c0_i32 = arith.constant 0 : i32
    %c0_i32_0 = arith.constant 0 : i32
    %c0_i32_1 = arith.constant 0 : i32
    return %arg0, %c0_i32, %c0_i32_0 : i32, i32, i32
  }
  func.func @transform_1(%arg0: i32) -> (i32, i32) {
    %c0_i32 = arith.constant 0 : i32
    %c0_i32_0 = arith.constant 0 : i32
    %c0_i32_1 = arith.constant 0 : i32
    return %c0_i32, %c0_i32_0 : i32, i32
  }
  func.func @transform_2(%arg0: i32) -> (i32, i32, i32) {
    %c0_i32 = arith.constant 0 : i32
    %c0_i32_0 = arith.constant 0 : i32
    %c0_i32_1 = arith.constant 0 : i32
    return %arg0, %c0_i32, %c0_i32_0 : i32, i32, i32
  }
}

</mosaic_0001>

<llo_original>
// kernel: tpu_custom_call.1
$region0: #{tpu_custom_call.1}
  #allocation0 [shape = 'u32[]', space=smem, size = 0x4, offset = 0x4, fixed_abs, tag = 'smem constant byte address 0x4 - core index']
  #allocation1 [shape = 'u32[72,128]{1,0:T(1,128)}', space=vmem, size = 0x9000, scoped, tag = 'internal scratch']
  %s0 = inlined_call_operand.vmem [shape: f32[2,4,256], index: 0, kind: input, shape index: {}]
  %s1 = inlined_call_operand.vmem [shape: f32[256,64], index: 1, kind: input, shape index: {}]
  %s2 = inlined_call_operand.hbm [shape: f32[2,8,64], index: 2, kind: output, shape index: {}]
  %s3 = sld [smem:[#allocation0]]
  $region41: #{tpu_custom_call.1} parent=0
    _
  %s5 = ssub.s32 1, %s3
  %s6 = scalar_select 0, %s5, %s3
  $region1: #{tpu_custom_call.1} parent=0
    #allocation2 [shape = 'u8[8192]{0}', space=vmem, size = 0x2000, scoped, tag = 'output window, operand 0']
    #allocation3 [shape = 's32[2]{0}', space=sflag, size = 0x8, scoped, tag = 'scoped memory for tpu_custom_call.1']
    %7 = vsyncpa [#allocation3], 0
    %s8 = scalar_lea.sflag [#allocation3], 1
    %9 = vsyncpa %s8, 0
    loop: start=0, step=1, limit=4
    $region2: #{tpu_custom_call.1} parent=1 // loop_pre_header
      _
    $region3: #{tpu_custom_call.1} parent=1 // loop_header
      %s11 = sphi 0, %s15
      %p12 = scmp.ge.s32.totalorder %s11, 4
      %s21 = sphi 0, %s23
      %s24 = sphi 0, %s21
      %s25 = sphi 0, %s24
      %s41 = sphi 0, %s25
      %s45 = sphi 0, %s45
      %s47 = sphi 0, %s45
      %s48 = sphi 0, %s47
      %s62 = sphi 0, %s48
      %s68 = sphi 0, %s70
      %s71 = sphi 0, %s68
      %s72 = sphi 0, %s71
      %s88 = sphi 0, %s72
    $region4: #{tpu_custom_call.1} parent=1 // loop_header_branch
      %14 = sbr.rel (%p12) target = $region8
    $region5: #{tpu_custom_call.1} parent=1 // loop_body
      %s16 = ssub.s32 %s11, 1
      %s17 = ssub.s32 %s11, 2
      %s18 = sadd.s32 %s11, 1
      %s19 = ssub.s32 %s11, %s18
      %p20 = scmp.eq.s32.totalorder %s19, 0
      %s22 = sadd.s32 %s21, 1
      %s23 = scalar_select %p20, %s21, %s22
      %p26 = pneg %p20
      %p27 = scmp.eq.s32.totalorder %s11, 1
      %p28 = por %p26, %p27
      %p29 = scmp.ne.s32.totalorder %s21, %s24
      %p30 = scmp.eq.s32.totalorder %s11, 0
      %p31 = por %p29, %p30
      %p32 = scmp.ne.s32.totalorder %s21, %s24
      %p33 = scmp.eq.s32.totalorder %s16, 1
      %p34 = por %p32, %p33
      %p35 = scmp.ne.s32.totalorder %s24, %s25
      %p36 = scmp.eq.s32.totalorder %s16, 0
      %p37 = por %p35, %p36
      %p38 = scmp.ne.s32.totalorder %s24, %s25
      %p39 = scmp.eq.s32.totalorder %s17, 1
      %p40 = por %p38, %p39
      %p42 = scmp.ne.s32.totalorder %s25, %s41
      %p43 = scmp.eq.s32.totalorder %s17, 0
      %p44 = por %p42, %p43
      %s46 = sadd.s32 %s45, 1
      %p49 = scmp.eq.s32.totalorder %s11, 1
      %p50 = scmp.ne.s32.totalorder %s45, %s47
      %p51 = scmp.eq.s32.totalorder %s11, 0
      %p52 = por %p50, %p51
      %p53 = scmp.ne.s32.totalorder %s45, %s47
      %p54 = scmp.eq.s32.totalorder %s16, 1
      %p55 = por %p53, %p54
      %p56 = scmp.ne.s32.totalorder %s47, %s48
      %p57 = scmp.eq.s32.totalorder %s16, 0
      %p58 = por %p56, %p57
      %p59 = scmp.ne.s32.totalorder %s47, %s48
      %p60 = scmp.eq.s32.totalorder %s17, 1
      %p61 = por %p59, %p60
      %p63 = scmp.ne.s32.totalorder %s48, %s62
      %p64 = scmp.eq.s32.totalorder %s17, 0
      %p65 = por %p63, %p64
      %s66 = ssub.s32 %s11, %s18
      %p67 = scmp.eq.s32.totalorder %s66, 0
      %s69 = sadd.s32 %s68, 1
      %s70 = scalar_select %p67, %s68, %s69
      %p73 = pneg %p67
      %p74 = scmp.eq.s32.totalorder %s11, 1
      %p75 = por %p73, %p74
      %p76 = scmp.ne.s32.totalorder %s68, %s71
      %p77 = scmp.eq.s32.totalorder %s11, 0
      %p78 = por %p76, %p77
      %p79 = scmp.ne.s32.totalorder %s68, %s71
      %p80 = scmp.eq.s32.totalorder %s16, 1
      %p81 = por %p79, %p80
      %p82 = scmp.ne.s32.totalorder %s71, %s72
      %p83 = scmp.eq.s32.totalorder %s16, 0
      %p84 = por %p82, %p83
      %p85 = scmp.ne.s32.totalorder %s71, %s72
      %p86 = scmp.eq.s32.totalorder %s17, 1
      %p87 = por %p85, %p86
      %p89 = scmp.ne.s32.totalorder %s72, %s88
      %p90 = scmp.eq.s32.totalorder %s17, 0
      %p91 = por %p89, %p90
      %p92 = scmp.le.s32.totalorder 1, %s11
      %p93 = scmp.lt.s32.totalorder %s11, 3
      %p94 = pnand %p92, %p93
      %p95 = pneg %p94
      // Predicated region
      $region9: #{tpu_custom_call.1} parent=5 // pred_check
        _
      $region10: #{tpu_custom_call.1} parent=5 // pred_check_branch
        %97 = sbr.rel (%p94) target = $region12
      $region11: #{tpu_custom_call.1} parent=5 // pred_region
        %s98 = ssub.s32 %s11, 1
        // Predicated region
        $region13: #{tpu_custom_call.1} parent=11 // pred_check
          %p99 = pneg %p58
        $region14: #{tpu_custom_call.1} parent=11 // pred_check_branch
          %101 = sbr.rel (%p99) target = $region16
        $region15: #{tpu_custom_call.1} parent=11 // pred_region
          _
        $region16: #{tpu_custom_call.1} parent=11 // pred_fallthru
          _
      $region12: #{tpu_custom_call.1} parent=5 // pred_fallthru
        _
      %p102 = scmp.lt.s32.totalorder %s11, 2
      // Predicated region
      $region17: #{tpu_custom_call.1} parent=5 // pred_check
        %p103 = pneg %p102
      $region18: #{tpu_custom_call.1} parent=5 // pred_check_branch
        %105 = sbr.rel (%p103) target = $region20
      $region19: #{tpu_custom_call.1} parent=5 // pred_region
        // Predicated region
        $region21: #{tpu_custom_call.1} parent=19 // pred_check
          %p106 = pneg %p31
        $region22: #{tpu_custom_call.1} parent=19 // pred_check_branch
          %108 = sbr.rel (%p106) target = $region24
        $region23: #{tpu_custom_call.1} parent=19 // pred_region
          %p109 = scmp.lt.s32.totalorder %s11, 1
          %s110 = scalar_select %p109, %s11, 1
          %s111 = smul.addr %s110, 2
          %s112 = smul.addr %s111, 4
          %s113 = scalar_lea.vmem %s0, %s112
        $region24: #{tpu_custom_call.1} parent=19 // pred_fallthru
          _
      $region20: #{tpu_custom_call.1} parent=5 // pred_fallthru
        _
      %p114 = scmp.le.s32.totalorder 1, %s11
      %p115 = scmp.lt.s32.totalorder %s11, 3
      %p116 = pnand %p114, %p115
      %p117 = pneg %p116
      // Predicated region
      $region25: #{tpu_custom_call.1} parent=5 // pred_check
        _
      $region26: #{tpu_custom_call.1} parent=5 // pred_check_branch
        %119 = sbr.rel (%p116) target = $region28
      $region27: #{tpu_custom_call.1} parent=5 // pred_region
        %s120 = ssub.s32 %s11, 1
        %p121 = scmp.lt.s32.totalorder %s16, 1
        %s122 = scalar_select %p121, %s16, 1
        %s123 = smul.addr %s122, 2
        %s124 = smul.addr %s123, 4
        %s125 = scalar_lea.vmem %s0, %s124
        %p126 = pneg %p37
        %p127 = pneg %p34
        %p128 = pneg %p58
        %p129 = pneg %p55
        %p130 = pneg %p84
        %p131 = pneg %p81
        %s132 = sand.u32 %s71, 1
        %s133 = scalar_lea.sflag [#allocation3], %s132
        %s134 = sand.u32 %s71, 1
        %s135 = smul.addr %s134, 8
        %s136 = scalar_lea.vmem [#allocation2], %s135
        %p137 = scmp.lt.s32.totalorder %s16, 1
        %s138 = scalar_select %p137, %s16, 1
        %s139 = smul.addr %s138, 2
        %s140 = smul.addr %s139, 4
        %s141 = scalar_lea.vmem %s0, %s140
        %v142 = vld [vmem:[%s141] sm:$0xff]
        %v143 = vld [vmem:[%s1] sm:$0xff]
        %v144 = vld [vmem:[%s1 + $0x8] sm:$0xff]
        %v145 = vld [vmem:[%s1 + $0x10] sm:$0xff]
        %v146 = vld [vmem:[%s1 + $0x18] sm:$0xff]
        %v147 = vld [vmem:[%s1 + $0x20] sm:$0xff]
        %v148 = vld [vmem:[%s1 + $0x28] sm:$0xff]
        %v149 = vld [vmem:[%s1 + $0x30] sm:$0xff]
        %v150 = vld [vmem:[%s1 + $0x38] sm:$0xff]
        %v151 = vld [vmem:[%s1 + $0x40] sm:$0xff]
        %v152 = vld [vmem:[%s1 + $0x48] sm:$0xff]
        %v153 = vld [vmem:[%s1 + $0x50] sm:$0xff]
        %v154 = vld [vmem:[%s1 + $0x58] sm:$0xff]
        %v155 = vld [vmem:[%s1 + $0x60] sm:$0xff]
        %v156 = vld [vmem:[%s1 + $0x68] sm:$0xff]
        %v157 = vld [vmem:[%s1 + $0x70] sm:$0xff]
        %v158 = vld [vmem:[%s1 + $0x78] sm:$0xff]
        %v159 = vld [vmem:[%s1 + $0x80] sm:$0xff]
        %v160 = vld [vmem:[%s1 + $0x88] sm:$0xff]
        %v161 = vld [vmem:[%s1 + $0x90] sm:$0xff]
        %v162 = vld [vmem:[%s1 + $0x98] sm:$0xff]
        %v163 = vld [vmem:[%s1 + $0xa0] sm:$0xff]
        %v164 = vld [vmem:[%s1 + $0xa8] sm:$0xff]
        %v165 = vld [vmem:[%s1 + $0xb0] sm:$0xff]
        %v166 = vld [vmem:[%s1 + $0xb8] sm:$0xff]
        %v167 = vld [vmem:[%s1 + $0xc0] sm:$0xff]
        %v168 = vld [vmem:[%s1 + $0xc8] sm:$0xff]
        %v169 = vld [vmem:[%s1 + $0xd0] sm:$0xff]
        %v170 = vld [vmem:[%s1 + $0xd8] sm:$0xff]
        %v171 = vld [vmem:[%s1 + $0xe0] sm:$0xff]
        %v172 = vld [vmem:[%s1 + $0xe8] sm:$0xff]
        %v173 = vld [vmem:[%s1 + $0xf0] sm:$0xff]
        %v174 = vld [vmem:[%s1 + $0xf8] sm:$0xff]
        %176 = vst [vmem:[#allocation1] ss:$2 sm:$0xff] %v142
        %v177 = vld.sshfl [vmem:[#allocation1] sm:$0xff pattern:$0x75316420]
        %v178 = vld.sshfl [vmem:[#allocation1 + $0x8] sm:$0xff pattern:$0x75316420]
        %v181 = vand.u32 %v158, 4294901760
        %182 = vmatpush.msra.mxu0 %v181
        %v183 = vand.u32 %v157, 4294901760
        %184 = vmatpush.msra.mxu0 %v183
        %v185 = vand.u32 %v156, 4294901760
        %186 = vmatpush.msra.mxu0 %v185
        %v187 = vand.u32 %v155, 4294901760
        %188 = vmatpush.msra.mxu0 %v187
        %v189 = vand.u32 %v154, 4294901760
        %190 = vmatpush.msra.mxu0 %v189
        %v191 = vand.u32 %v153, 4294901760
        %192 = vmatpush.msra.mxu0 %v191
        %v193 = vand.u32 %v152, 4294901760
        %194 = vmatpush.msra.mxu0 %v193
        %v195 = vand.u32 %v151, 4294901760
        %196 = vmatpush.msra.mxu0 %v195
        %v197 = vand.u32 %v150, 4294901760
        %198 = vmatpush.msra.mxu0 %v197
        %v199 = vand.u32 %v149, 4294901760
        %200 = vmatpush.msra.mxu0 %v199
        %v201 = vand.u32 %v148, 4294901760
        %202 = vmatpush.msra.mxu0 %v201
        %v203 = vand.u32 %v147, 4294901760
        %204 = vmatpush.msra.mxu0 %v203
        %v205 = vand.u32 %v146, 4294901760
        %206 = vmatpush.msra.mxu0 %v205
        %v207 = vand.u32 %v145, 4294901760
        %208 = vmatpush.msra.mxu0 %v207
        %v209 = vand.u32 %v144, 4294901760
        %210 = vmatpush.msra.mxu0 %v209
        %v211 = vand.u32 %v143, 4294901760
        %212 = vmatpush.msra.mxu0 %v211
        %v213 = vand.u32 %v177, 4294901760
        %v214 = vsub.f32 %v177, %v213
        %v215 = vand.u32 %v214, 4294901760
        %v216 = vsub.f32 %v214, %v215
        %v217 = vand.u32 %v216, 4294901760
        %218 = vmatmul.f32.gmra.mxu0 %v217
        %v219 = vpop.f32.mrf.mxu0
        %v220 = vadd.f32 0.0, %v219
        %221 = vdwg.mxu0
        %v222 = vand.u32 %v158, 4294901760
        %v223 = vsub.f32 %v158, %v222
        %v224 = vand.u32 %v223, 4294901760
        %v225 = vsub.f32 %v223, %v224
        %v226 = vand.u32 %v225, 4294901760
        %227 = vmatpush.msra.mxu0 %v226
        %v228 = vand.u32 %v157, 4294901760
        %v229 = vsub.f32 %v157, %v228
        %v230 = vand.u32 %v229, 4294901760
        %v231 = vsub.f32 %v229, %v230
        %v232 = vand.u32 %v231, 4294901760
        %233 = vmatpush.msra.mxu0 %v232
        %v234 = vand.u32 %v156, 4294901760
        %v235 = vsub.f32 %v156, %v234
        %v236 = vand.u32 %v235, 4294901760
        %v237 = vsub.f32 %v235, %v236
        %v238 = vand.u32 %v237, 4294901760
        %239 = vmatpush.msra.mxu0 %v238
        %v240 = vand.u32 %v155, 4294901760
        %v241 = vsub.f32 %v155, %v240
        %v242 = vand.u32 %v241, 4294901760
        %v243 = vsub.f32 %v241, %v242
        %v244 = vand.u32 %v243, 4294901760
        %245 = vmatpush.msra.mxu0 %v244
        %v246 = vand.u32 %v154, 4294901760
        %v247 = vsub.f32 %v154, %v246
        %v248 = vand.u32 %v247, 4294901760
        %v249 = vsub.f32 %v247, %v248
        %v250 = vand.u32 %v249, 4294901760
        %251 = vmatpush.msra.mxu0 %v250
        %v252 = vand.u32 %v153, 4294901760
        %v253 = vsub.f32 %v153, %v252
        %v254 = vand.u32 %v253, 4294901760
        %v255 = vsub.f32 %v253, %v254
        %v256 = vand.u32 %v255, 4294901760
        %257 = vmatpush.msra.mxu0 %v256
        %v258 = vand.u32 %v152, 4294901760
        %v259 = vsub.f32 %v152, %v258
        %v260 = vand.u32 %v259, 4294901760
        %v261 = vsub.f32 %v259, %v260
        %v262 = vand.u32 %v261, 4294901760
        %263 = vmatpush.msra.mxu0 %v262
        %v264 = vand.u32 %v151, 4294901760
        %v265 = vsub.f32 %v151, %v264
        %v266 = vand.u32 %v265, 4294901760
        %v267 = vsub.f32 %v265, %v266
        %v268 = vand.u32 %v267, 4294901760
        %269 = vmatpush.msra.mxu0 %v268
        %v270 = vand.u32 %v150, 4294901760
        %v271 = vsub.f32 %v150, %v270
        %v272 = vand.u32 %v271, 4294901760
        %v273 = vsub.f32 %v271, %v272
        %v274 = vand.u32 %v273, 4294901760
        %275 = vmatpush.msra.mxu0 %v274
        %v276 = vand.u32 %v149, 4294901760
        %v277 = vsub.f32 %v149, %v276
        %v278 = vand.u32 %v277, 4294901760
        %v279 = vsub.f32 %v277, %v278
        %v280 = vand.u32 %v279, 4294901760
        %281 = vmatpush.msra.mxu0 %v280
        %v282 = vand.u32 %v148, 4294901760
        %v283 = vsub.f32 %v148, %v282
        %v284 = vand.u32 %v283, 4294901760
        %v285 = vsub.f32 %v283, %v284
        %v286 = vand.u32 %v285, 4294901760
        %287 = vmatpush.msra.mxu0 %v286
        %v288 = vand.u32 %v147, 4294901760
        %v289 = vsub.f32 %v147, %v288
        %v290 = vand.u32 %v289, 4294901760
        %v291 = vsub.f32 %v289, %v290
        %v292 = vand.u32 %v291, 4294901760
        %293 = vmatpush.msra.mxu0 %v292
        %v294 = vand.u32 %v146, 4294901760
        %v295 = vsub.f32 %v146, %v294
        %v296 = vand.u32 %v295, 4294901760
        %v297 = vsub.f32 %v295, %v296
        %v298 = vand.u32 %v297, 4294901760
        %299 = vmatpush.msra.mxu0 %v298
        %v300 = vand.u32 %v145, 4294901760
        %v301 = vsub.f32 %v145, %v300
        %v302 = vand.u32 %v301, 4294901760
        %v303 = vsub.f32 %v301, %v302
        %v304 = vand.u32 %v303, 4294901760
        %305 = vmatpush.msra.mxu0 %v304
        %v306 = vand.u32 %v144, 4294901760
        %v307 = vsub.f32 %v144, %v306
        %v308 = vand.u32 %v307, 4294901760
        %v309 = vsub.f32 %v307, %v308
        %v310 = vand.u32 %v309, 4294901760
        %311 = vmatpush.msra.mxu0 %v310
        %v312 = vand.u32 %v143, 4294901760
        %v313 = vsub.f32 %v143, %v312
        %v314 = vand.u32 %v313, 4294901760
        %v315 = vsub.f32 %v313, %v314
        %v316 = vand.u32 %v315, 4294901760
        %317 = vmatpush.msra.mxu0 %v316
        %v318 = vand.u32 %v177, 4294901760
        %319 = vmatmul.f32.gmra.mxu0 %v318
        %v320 = vpop.f32.mrf.mxu0
        %v321 = vadd.f32 %v220, %v320
        %322 = vdwg.mxu0
        %v323 = vand.u32 %v158, 4294901760
        %v324 = vsub.f32 %v158, %v323
        %325 = vmatpush.msra.mxu0 %v324
        %v326 = vand.u32 %v157, 4294901760
        %v327 = vsub.f32 %v157, %v326
        %328 = vmatpush.msra.mxu0 %v327
        %v329 = vand.u32 %v156, 4294901760
        %v330 = vsub.f32 %v156, %v329
        %331 = vmatpush.msra.mxu0 %v330
        %v332 = vand.u32 %v155, 4294901760
        %v333 = vsub.f32 %v155, %v332
        %334 = vmatpush.msra.mxu0 %v333
        %v335 = vand.u32 %v154, 4294901760
        %v336 = vsub.f32 %v154, %v335
        %337 = vmatpush.msra.mxu0 %v336
        %v338 = vand.u32 %v153, 4294901760
        %v339 = vsub.f32 %v153, %v338
        %340 = vmatpush.msra.mxu0 %v339
        %v341 = vand.u32 %v152, 4294901760
        %v342 = vsub.f32 %v152, %v341
        %343 = vmatpush.msra.mxu0 %v342
        %v344 = vand.u32 %v151, 4294901760
        %v345 = vsub.f32 %v151, %v344
        %346 = vmatpush.msra.mxu0 %v345
        %v347 = vand.u32 %v150, 4294901760
        %v348 = vsub.f32 %v150, %v347
        %349 = vmatpush.msra.mxu0 %v348
        %v350 = vand.u32 %v149, 4294901760
        %v351 = vsub.f32 %v149, %v350
        %352 = vmatpush.msra.mxu0 %v351
        %v353 = vand.u32 %v148, 4294901760
        %v354 = vsub.f32 %v148, %v353
        %355 = vmatpush.msra.mxu0 %v354
        %v356 = vand.u32 %v147, 4294901760
        %v357 = vsub.f32 %v147, %v356
        %358 = vmatpush.msra.mxu0 %v357
        %v359 = vand.u32 %v146, 4294901760
        %v360 = vsub.f32 %v146, %v359
        %361 = vmatpush.msra.mxu0 %v360
        %v362 = vand.u32 %v145, 4294901760
        %v363 = vsub.f32 %v145, %v362
        %364 = vmatpush.msra.mxu0 %v363
        %v365 = vand.u32 %v144, 4294901760
        %v366 = vsub.f32 %v144, %v365
        %367 = vmatpush.msra.mxu0 %v366
        %v368 = vand.u32 %v143, 4294901760
        %v369 = vsub.f32 %v143, %v368
        %370 = vmatpush.msra.mxu0 %v369
        %v371 = vand.u32 %v177, 4294901760
        %v372 = vsub.f32 %v177, %v371
        %373 = vmatmul.f32.gmra.mxu0 %v372
        %v374 = vpop.f32.mrf.mxu0
        %v375 = vadd.f32 %v321, %v374
        %376 = vdwg.mxu0
        %v377 = vand.u32 %v158, 4294901760
        %378 = vmatpush.msra.mxu0 %v377
        %v379 = vand.u32 %v157, 4294901760
        %380 = vmatpush.msra.mxu0 %v379
        %v381 = vand.u32 %v156, 4294901760
        %382 = vmatpush.msra.mxu0 %v381
        %v383 = vand.u32 %v155, 4294901760
        %384 = vmatpush.msra.mxu0 %v383
        %v385 = vand.u32 %v154, 4294901760
        %386 = vmatpush.msra.mxu0 %v385
        %v387 = vand.u32 %v153, 4294901760
        %388 = vmatpush.msra.mxu0 %v387
        %v389 = vand.u32 %v152, 4294901760
        %390 = vmatpush.msra.mxu0 %v389
        %v391 = vand.u32 %v151, 4294901760
        %392 = vmatpush.msra.mxu0 %v391
        %v393 = vand.u32 %v150, 4294901760
        %394 = vmatpush.msra.mxu0 %v393
        %v395 = vand.u32 %v149, 4294901760
        %396 = vmatpush.msra.mxu0 %v395
        %v397 = vand.u32 %v148, 4294901760
        %398 = vmatpush.msra.mxu0 %v397
        %v399 = vand.u32 %v147, 4294901760
        %400 = vmatpush.msra.mxu0 %v399
        %v401 = vand.u32 %v146, 4294901760
        %402 = vmatpush.msra.mxu0 %v401
        %v403 = vand.u32 %v145, 4294901760
        %404 = vmatpush.msra.mxu0 %v403
        %v405 = vand.u32 %v144, 4294901760
        %406 = vmatpush.msra.mxu0 %v405
        %v407 = vand.u32 %v143, 4294901760
        %408 = vmatpush.msra.mxu0 %v407
        %v409 = vand.u32 %v177, 4294901760
        %v410 = vsub.f32 %v177, %v409
        %v411 = vand.u32 %v410, 4294901760
        %412 = vmatmul.f32.gmra.mxu0 %v411
        %v413 = vpop.f32.mrf.mxu0
        %v414 = vadd.f32 %v375, %v413
        %415 = vdwg.mxu0
        %v416 = vand.u32 %v158, 4294901760
        %v417 = vsub.f32 %v158, %v416
        %v418 = vand.u32 %v417, 4294901760
        %419 = vmatpush.msra.mxu0 %v418
        %v420 = vand.u32 %v157, 4294901760
        %v421 = vsub.f32 %v157, %v420
        %v422 = vand.u32 %v421, 4294901760
        %423 = vmatpush.msra.mxu0 %v422
        %v424 = vand.u32 %v156, 4294901760
        %v425 = vsub.f32 %v156, %v424
        %v426 = vand.u32 %v425, 4294901760
        %427 = vmatpush.msra.mxu0 %v426
        %v428 = vand.u32 %v155, 4294901760
        %v429 = vsub.f32 %v155, %v428
        %v430 = vand.u32 %v429, 4294901760
        %431 = vmatpush.msra.mxu0 %v430
        %v432 = vand.u32 %v154, 4294901760
        %v433 = vsub.f32 %v154, %v432
        %v434 = vand.u32 %v433, 4294901760
        %435 = vmatpush.msra.mxu0 %v434
        %v436 = vand.u32 %v153, 4294901760
        %v437 = vsub.f32 %v153, %v436
        %v438 = vand.u32 %v437, 4294901760
        %439 = vmatpush.msra.mxu0 %v438
        %v440 = vand.u32 %v152, 4294901760
        %v441 = vsub.f32 %v152, %v440
        %v442 = vand.u32 %v441, 4294901760
        %443 = vmatpush.msra.mxu0 %v442
        %v444 = vand.u32 %v151, 4294901760
        %v445 = vsub.f32 %v151, %v444
        %v446 = vand.u32 %v445, 4294901760
        %447 = vmatpush.msra.mxu0 %v446
        %v448 = vand.u32 %v150, 4294901760
        %v449 = vsub.f32 %v150, %v448
        %v450 = vand.u32 %v449, 4294901760
        %451 = vmatpush.msra.mxu0 %v450
        %v452 = vand.u32 %v149, 4294901760
        %v453 = vsub.f32 %v149, %v452
        %v454 = vand.u32 %v453, 4294901760
        %455 = vmatpush.msra.mxu0 %v454
        %v456 = vand.u32 %v148, 4294901760
        %v457 = vsub.f32 %v148, %v456
        %v458 = vand.u32 %v457, 4294901760
        %459 = vmatpush.msra.mxu0 %v458
        %v460 = vand.u32 %v147, 4294901760
        %v461 = vsub.f32 %v147, %v460
        %v462 = vand.u32 %v461, 4294901760
        %463 = vmatpush.msra.mxu0 %v462
        %v464 = vand.u32 %v146, 4294901760
        %v465 = vsub.f32 %v146, %v464
        %v466 = vand.u32 %v465, 4294901760
        %467 = vmatpush.msra.mxu0 %v466
        %v468 = vand.u32 %v145, 4294901760
        %v469 = vsub.f32 %v145, %v468
        %v470 = vand.u32 %v469, 4294901760
        %471 = vmatpush.msra.mxu0 %v470
        %v472 = vand.u32 %v144, 4294901760
        %v473 = vsub.f32 %v144, %v472
        %v474 = vand.u32 %v473, 4294901760
        %475 = vmatpush.msra.mxu0 %v474
        %v476 = vand.u32 %v143, 4294901760
        %v477 = vsub.f32 %v143, %v476
        %v478 = vand.u32 %v477, 4294901760
        %479 = vmatpush.msra.mxu0 %v478
        %v480 = vand.u32 %v177, 4294901760
        %481 = vmatmul.f32.gmra.mxu0 %v480
        %v482 = vpop.f32.mrf.mxu0
        %v483 = vadd.f32 %v414, %v482
        %484 = vdwg.mxu0
        %v485 = vand.u32 %v158, 4294901760
        %486 = vmatpush.msra.mxu0 %v485
        %v487 = vand.u32 %v157, 4294901760
        %488 = vmatpush.msra.mxu0 %v487
        %v489 = vand.u32 %v156, 4294901760
        %490 = vmatpush.msra.mxu0 %v489
        %v491 = vand.u32 %v155, 4294901760
        %492 = vmatpush.msra.mxu0 %v491
        %v493 = vand.u32 %v154, 4294901760
        %494 = vmatpush.msra.mxu0 %v493
        %v495 = vand.u32 %v153, 4294901760
        %496 = vmatpush.msra.mxu0 %v495
        %v497 = vand.u32 %v152, 4294901760
        %498 = vmatpush.msra.mxu0 %v497
        %v499 = vand.u32 %v151, 4294901760
        %500 = vmatpush.msra.mxu0 %v499
        %v501 = vand.u32 %v150, 4294901760
        %502 = vmatpush.msra.mxu0 %v501
        %v503 = vand.u32 %v149, 4294901760
        %504 = vmatpush.msra.mxu0 %v503
        %v505 = vand.u32 %v148, 4294901760
        %506 = vmatpush.msra.mxu0 %v505
        %v507 = vand.u32 %v147, 4294901760
        %508 = vmatpush.msra.mxu0 %v507
        %v509 = vand.u32 %v146, 4294901760
        %510 = vmatpush.msra.mxu0 %v509
        %v511 = vand.u32 %v145, 4294901760
        %512 = vmatpush.msra.mxu0 %v511
        %v513 = vand.u32 %v144, 4294901760
        %514 = vmatpush.msra.mxu0 %v513
        %v515 = vand.u32 %v143, 4294901760
        %516 = vmatpush.msra.mxu0 %v515
        %v517 = vand.u32 %v177, 4294901760
        %518 = vmatmul.f32.gmra.mxu0 %v517
        %v519 = vpop.f32.mrf.mxu0
        %v520 = vadd.f32 %v483, %v519
        %521 = vdwg.mxu0
        %v522 = vand.u32 %v174, 4294901760
        %523 = vmatpush.msra.mxu0 %v522
        %v524 = vand.u32 %v173, 4294901760
        %525 = vmatpush.msra.mxu0 %v524
        %v526 = vand.u32 %v172, 4294901760
        %527 = vmatpush.msra.mxu0 %v526
        %v528 = vand.u32 %v171, 4294901760
        %529 = vmatpush.msra.mxu0 %v528
        %v530 = vand.u32 %v170, 4294901760
        %531 = vmatpush.msra.mxu0 %v530
        %v532 = vand.u32 %v169, 4294901760
        %533 = vmatpush.msra.mxu0 %v532
        %v534 = vand.u32 %v168, 4294901760
        %535 = vmatpush.msra.mxu0 %v534
        %v536 = vand.u32 %v167, 4294901760
        %537 = vmatpush.msra.mxu0 %v536
        %v538 = vand.u32 %v166, 4294901760
        %539 = vmatpush.msra.mxu0 %v538
        %v540 = vand.u32 %v165, 4294901760
        %541 = vmatpush.msra.mxu0 %v540
        %v542 = vand.u32 %v164, 4294901760
        %543 = vmatpush.msra.mxu0 %v542
        %v544 = vand.u32 %v163, 4294901760
        %545 = vmatpush.msra.mxu0 %v544
        %v546 = vand.u32 %v162, 4294901760
        %547 = vmatpush.msra.mxu0 %v546
        %v548 = vand.u32 %v161, 4294901760
        %549 = vmatpush.msra.mxu0 %v548
        %v550 = vand.u32 %v160, 4294901760
        %551 = vmatpush.msra.mxu0 %v550
        %v552 = vand.u32 %v159, 4294901760
        %553 = vmatpush.msra.mxu0 %v552
        %v554 = vand.u32 %v178, 4294901760
        %v555 = vsub.f32 %v178, %v554
        %v556 = vand.u32 %v555, 4294901760
        %v557 = vsub.f32 %v555, %v556
        %v558 = vand.u32 %v557, 4294901760
        %559 = vmatmul.f32.gmra.mxu0 %v558
        %v560 = vpop.f32.mrf.mxu0
        %v561 = vadd.f32 %v520, %v560
        %562 = vdwg.mxu0
        %v563 = vand.u32 %v174, 4294901760
        %v564 = vsub.f32 %v174, %v563
        %v565 = vand.u32 %v564, 4294901760
        %v566 = vsub.f32 %v564, %v565
        %v567 = vand.u32 %v566, 4294901760
        %568 = vmatpush.msra.mxu0 %v567
        %v569 = vand.u32 %v173, 4294901760
        %v570 = vsub.f32 %v173, %v569
        %v571 = vand.u32 %v570, 4294901760
        %v572 = vsub.f32 %v570, %v571
        %v573 = vand.u32 %v572, 4294901760
        %574 = vmatpush.msra.mxu0 %v573
        %v575 = vand.u32 %v172, 4294901760
        %v576 = vsub.f32 %v172, %v575
        %v577 = vand.u32 %v576, 4294901760
        %v578 = vsub.f32 %v576, %v577
        %v579 = vand.u32 %v578, 4294901760
        %580 = vmatpush.msra.mxu0 %v579
        %v581 = vand.u32 %v171, 4294901760
        %v582 = vsub.f32 %v171, %v581
        %v583 = vand.u32 %v582, 4294901760
        %v584 = vsub.f32 %v582, %v583
        %v585 = vand.u32 %v584, 4294901760
        %586 = vmatpush.msra.mxu0 %v585
        %v587 = vand.u32 %v170, 4294901760
        %v588 = vsub.f32 %v170, %v587
        %v589 = vand.u32 %v588, 4294901760
        %v590 = vsub.f32 %v588, %v589
        %v591 = vand.u32 %v590, 4294901760
        %592 = vmatpush.msra.mxu0 %v591
        %v593 = vand.u32 %v169, 4294901760
        %v594 = vsub.f32 %v169, %v593
        %v595 = vand.u32 %v594, 4294901760
        %v596 = vsub.f32 %v594, %v595
        %v597 = vand.u32 %v596, 4294901760
        %598 = vmatpush.msra.mxu0 %v597
        %v599 = vand.u32 %v168, 4294901760
        %v600 = vsub.f32 %v168, %v599
        %v601 = vand.u32 %v600, 4294901760
        %v602 = vsub.f32 %v600, %v601
        %v603 = vand.u32 %v602, 4294901760
        %604 = vmatpush.msra.mxu0 %v603
        %v605 = vand.u32 %v167, 4294901760
        %v606 = vsub.f32 %v167, %v605
        %v607 = vand.u32 %v606, 4294901760
        %v608 = vsub.f32 %v606, %v607
        %v609 = vand.u32 %v608, 4294901760
        %610 = vmatpush.msra.mxu0 %v609
        %v611 = vand.u32 %v166, 4294901760
        %v612 = vsub.f32 %v166, %v611
        %v613 = vand.u32 %v612, 4294901760
        %v614 = vsub.f32 %v612, %v613
        %v615 = vand.u32 %v614, 4294901760
        %616 = vmatpush.msra.mxu0 %v615
        %v617 = vand.u32 %v165, 4294901760
        %v618 = vsub.f32 %v165, %v617
        %v619 = vand.u32 %v618, 4294901760
        %v620 = vsub.f32 %v618, %v619
        %v621 = vand.u32 %v620, 4294901760
        %622 = vmatpush.msra.mxu0 %v621
        %v623 = vand.u32 %v164, 4294901760
        %v624 = vsub.f32 %v164, %v623
        %v625 = vand.u32 %v624, 4294901760
        %v626 = vsub.f32 %v624, %v625
        %v627 = vand.u32 %v626, 4294901760
        %628 = vmatpush.msra.mxu0 %v627
        %v629 = vand.u32 %v163, 4294901760
        %v630 = vsub.f32 %v163, %v629
        %v631 = vand.u32 %v630, 4294901760
        %v632 = vsub.f32 %v630, %v631
        %v633 = vand.u32 %v632, 4294901760
        %634 = vmatpush.msra.mxu0 %v633
        %v635 = vand.u32 %v162, 4294901760
        %v636 = vsub.f32 %v162, %v635
        %v637 = vand.u32 %v636, 4294901760
        %v638 = vsub.f32 %v636, %v637
        %v639 = vand.u32 %v638, 4294901760
        %640 = vmatpush.msra.mxu0 %v639
        %v641 = vand.u32 %v161, 4294901760
        %v642 = vsub.f32 %v161, %v641
        %v643 = vand.u32 %v642, 4294901760
        %v644 = vsub.f32 %v642, %v643
        %v645 = vand.u32 %v644, 4294901760
        %646 = vmatpush.msra.mxu0 %v645
        %v647 = vand.u32 %v160, 4294901760
        %v648 = vsub.f32 %v160, %v647
        %v649 = vand.u32 %v648, 4294901760
        %v650 = vsub.f32 %v648, %v649
        %v651 = vand.u32 %v650, 4294901760
        %652 = vmatpush.msra.mxu0 %v651
        %v653 = vand.u32 %v159, 4294901760
        %v654 = vsub.f32 %v159, %v653
        %v655 = vand.u32 %v654, 4294901760
        %v656 = vsub.f32 %v654, %v655
        %v657 = vand.u32 %v656, 4294901760
        %658 = vmatpush.msra.mxu0 %v657
        %v659 = vand.u32 %v178, 4294901760
        %660 = vmatmul.f32.gmra.mxu0 %v659
        %v661 = vpop.f32.mrf.mxu0
        %v662 = vadd.f32 %v561, %v661
        %663 = vdwg.mxu0
        %v664 = vand.u32 %v174, 4294901760
        %v665 = vsub.f32 %v174, %v664
        %666 = vmatpush.msra.mxu0 %v665
        %v667 = vand.u32 %v173, 4294901760
        %v668 = vsub.f32 %v173, %v667
        %669 = vmatpush.msra.mxu0 %v668
        %v670 = vand.u32 %v172, 4294901760
        %v671 = vsub.f32 %v172, %v670
        %672 = vmatpush.msra.mxu0 %v671
        %v673 = vand.u32 %v171, 4294901760
        %v674 = vsub.f32 %v171, %v673
        %675 = vmatpush.msra.mxu0 %v674
        %v676 = vand.u32 %v170, 4294901760
        %v677 = vsub.f32 %v170, %v676
        %678 = vmatpush.msra.mxu0 %v677
        %v679 = vand.u32 %v169, 4294901760
        %v680 = vsub.f32 %v169, %v679
        %681 = vmatpush.msra.mxu0 %v680
        %v682 = vand.u32 %v168, 4294901760
        %v683 = vsub.f32 %v168, %v682
        %684 = vmatpush.msra.mxu0 %v683
        %v685 = vand.u32 %v167, 4294901760
        %v686 = vsub.f32 %v167, %v685
        %687 = vmatpush.msra.mxu0 %v686
        %v688 = vand.u32 %v166, 4294901760
        %v689 = vsub.f32 %v166, %v688
        %690 = vmatpush.msra.mxu0 %v689
        %v691 = vand.u32 %v165, 4294901760
        %v692 = vsub.f32 %v165, %v691
        %693 = vmatpush.msra.mxu0 %v692
        %v694 = vand.u32 %v164, 4294901760
        %v695 = vsub.f32 %v164, %v694
        %696 = vmatpush.msra.mxu0 %v695
        %v697 = vand.u32 %v163, 4294901760
        %v698 = vsub.f32 %v163, %v697
        %699 = vmatpush.msra.mxu0 %v698
        %v700 = vand.u32 %v162, 4294901760
        %v701 = vsub.f32 %v162, %v700
        %702 = vmatpush.msra.mxu0 %v701
        %v703 = vand.u32 %v161, 4294901760
        %v704 = vsub.f32 %v161, %v703
        %705 = vmatpush.msra.mxu0 %v704
        %v706 = vand.u32 %v160, 4294901760
        %v707 = vsub.f32 %v160, %v706
        %708 = vmatpush.msra.mxu0 %v707
        %v709 = vand.u32 %v159, 4294901760
        %v710 = vsub.f32 %v159, %v709
        %711 = vmatpush.msra.mxu0 %v710
        %v712 = vand.u32 %v178, 4294901760
        %v713 = vsub.f32 %v178, %v712
        %714 = vmatmul.f32.gmra.mxu0 %v713
        %v715 = vpop.f32.mrf.mxu0
        %v716 = vadd.f32 %v662, %v715
        %717 = vdwg.mxu0
        %v718 = vand.u32 %v174, 4294901760
        %719 = vmatpush.msra.mxu0 %v718
        %v720 = vand.u32 %v173, 4294901760
        %721 = vmatpush.msra.mxu0 %v720
        %v722 = vand.u32 %v172, 4294901760
        %723 = vmatpush.msra.mxu0 %v722
        %v724 = vand.u32 %v171, 4294901760
        %725 = vmatpush.msra.mxu0 %v724
        %v726 = vand.u32 %v170, 4294901760
        %727 = vmatpush.msra.mxu0 %v726
        %v728 = vand.u32 %v169, 4294901760
        %729 = vmatpush.msra.mxu0 %v728
        %v730 = vand.u32 %v168, 4294901760
        %731 = vmatpush.msra.mxu0 %v730
        %v732 = vand.u32 %v167, 4294901760
        %733 = vmatpush.msra.mxu0 %v732
        %v734 = vand.u32 %v166, 4294901760
        %735 = vmatpush.msra.mxu0 %v734
        %v736 = vand.u32 %v165, 4294901760
        %737 = vmatpush.msra.mxu0 %v736
        %v738 = vand.u32 %v164, 4294901760
        %739 = vmatpush.msra.mxu0 %v738
        %v740 = vand.u32 %v163, 4294901760
        %741 = vmatpush.msra.mxu0 %v740
        %v742 = vand.u32 %v162, 4294901760
        %743 = vmatpush.msra.mxu0 %v742
        %v744 = vand.u32 %v161, 4294901760
        %745 = vmatpush.msra.mxu0 %v744
        %v746 = vand.u32 %v160, 4294901760
        %747 = vmatpush.msra.mxu0 %v746
        %v748 = vand.u32 %v159, 4294901760
        %749 = vmatpush.msra.mxu0 %v748
        %v750 = vand.u32 %v178, 4294901760
        %v751 = vsub.f32 %v178, %v750
        %v752 = vand.u32 %v751, 4294901760
        %753 = vmatmul.f32.gmra.mxu0 %v752
        %v754 = vpop.f32.mrf.mxu0
        %v755 = vadd.f32 %v716, %v754
        %756 = vdwg.mxu0
        %v757 = vand.u32 %v174, 4294901760
        %v758 = vsub.f32 %v174, %v757
        %v759 = vand.u32 %v758, 4294901760
        %760 = vmatpush.msra.mxu0 %v759
        %v761 = vand.u32 %v173, 4294901760
        %v762 = vsub.f32 %v173, %v761
        %v763 = vand.u32 %v762, 4294901760
        %764 = vmatpush.msra.mxu0 %v763
        %v765 = vand.u32 %v172, 4294901760
        %v766 = vsub.f32 %v172, %v765
        %v767 = vand.u32 %v766, 4294901760
        %768 = vmatpush.msra.mxu0 %v767
        %v769 = vand.u32 %v171, 4294901760
        %v770 = vsub.f32 %v171, %v769
        %v771 = vand.u32 %v770, 4294901760
        %772 = vmatpush.msra.mxu0 %v771
        %v773 = vand.u32 %v170, 4294901760
        %v774 = vsub.f32 %v170, %v773
        %v775 = vand.u32 %v774, 4294901760
        %776 = vmatpush.msra.mxu0 %v775
        %v777 = vand.u32 %v169, 4294901760
        %v778 = vsub.f32 %v169, %v777
        %v779 = vand.u32 %v778, 4294901760
        %780 = vmatpush.msra.mxu0 %v779
        %v781 = vand.u32 %v168, 4294901760
        %v782 = vsub.f32 %v168, %v781
        %v783 = vand.u32 %v782, 4294901760
        %784 = vmatpush.msra.mxu0 %v783
        %v785 = vand.u32 %v167, 4294901760
        %v786 = vsub.f32 %v167, %v785
        %v787 = vand.u32 %v786, 4294901760
        %788 = vmatpush.msra.mxu0 %v787
        %v789 = vand.u32 %v166, 4294901760
        %v790 = vsub.f32 %v166, %v789
        %v791 = vand.u32 %v790, 4294901760
        %792 = vmatpush.msra.mxu0 %v791
        %v793 = vand.u32 %v165, 4294901760
        %v794 = vsub.f32 %v165, %v793
        %v795 = vand.u32 %v794, 4294901760
        %796 = vmatpush.msra.mxu0 %v795
        %v797 = vand.u32 %v164, 4294901760
        %v798 = vsub.f32 %v164, %v797
        %v799 = vand.u32 %v798, 4294901760
        %800 = vmatpush.msra.mxu0 %v799
        %v801 = vand.u32 %v163, 4294901760
        %v802 = vsub.f32 %v163, %v801
        %v803 = vand.u32 %v802, 4294901760
        %804 = vmatpush.msra.mxu0 %v803
        %v805 = vand.u32 %v162, 4294901760
        %v806 = vsub.f32 %v162, %v805
        %v807 = vand.u32 %v806, 4294901760
        %808 = vmatpush.msra.mxu0 %v807
        %v809 = vand.u32 %v161, 4294901760
        %v810 = vsub.f32 %v161, %v809
        %v811 = vand.u32 %v810, 4294901760
        %812 = vmatpush.msra.mxu0 %v811
        %v813 = vand.u32 %v160, 4294901760
        %v814 = vsub.f32 %v160, %v813
        %v815 = vand.u32 %v814, 4294901760
        %816 = vmatpush.msra.mxu0 %v815
        %v817 = vand.u32 %v159, 4294901760
        %v818 = vsub.f32 %v159, %v817
        %v819 = vand.u32 %v818, 4294901760
        %820 = vmatpush.msra.mxu0 %v819
        %v821 = vand.u32 %v178, 4294901760
        %822 = vmatmul.f32.gmra.mxu0 %v821
        %v823 = vpop.f32.mrf.mxu0
        %v824 = vadd.f32 %v755, %v823
        %825 = vdwg.mxu0
        %v826 = vand.u32 %v174, 4294901760
        %827 = vmatpush.msra.mxu0 %v826
        %v828 = vand.u32 %v173, 4294901760
        %829 = vmatpush.msra.mxu0 %v828
        %v830 = vand.u32 %v172, 4294901760
        %831 = vmatpush.msra.mxu0 %v830
        %v832 = vand.u32 %v171, 4294901760
        %833 = vmatpush.msra.mxu0 %v832
        %v834 = vand.u32 %v170, 4294901760
        %835 = vmatpush.msra.mxu0 %v834
        %v836 = vand.u32 %v169, 4294901760
        %837 = vmatpush.msra.mxu0 %v836
        %v838 = vand.u32 %v168, 4294901760
        %839 = vmatpush.msra.mxu0 %v838
        %v840 = vand.u32 %v167, 4294901760
        %841 = vmatpush.msra.mxu0 %v840
        %v842 = vand.u32 %v166, 4294901760
        %843 = vmatpush.msra.mxu0 %v842
        %v844 = vand.u32 %v165, 4294901760
        %845 = vmatpush.msra.mxu0 %v844
        %v846 = vand.u32 %v164, 4294901760
        %847 = vmatpush.msra.mxu0 %v846
        %v848 = vand.u32 %v163, 4294901760
        %849 = vmatpush.msra.mxu0 %v848
        %v850 = vand.u32 %v162, 4294901760
        %851 = vmatpush.msra.mxu0 %v850
        %v852 = vand.u32 %v161, 4294901760
        %853 = vmatpush.msra.mxu0 %v852
        %v854 = vand.u32 %v160, 4294901760
        %855 = vmatpush.msra.mxu0 %v854
        %v856 = vand.u32 %v159, 4294901760
        %857 = vmatpush.msra.mxu0 %v856
        %v858 = vand.u32 %v178, 4294901760
        %859 = vmatmul.f32.gmra.mxu0 %v858
        %v860 = vpop.f32.mrf.mxu0
        %v861 = vadd.f32 %v824, %v860
        %862 = vdwg.mxu0
        %vm863 = vcmask 523264
        %864 = vst.msk [vmem:[%s136] sm:$0xff] %vm863, 0.0
        %vm865 = vcmask 519168
        %866 = vst.msk [vmem:[%s136 + $0x2] sm:$0xf] %vm865, %v861
        %s867 = sand.u32 %s71, 1
        %s868 = scalar_lea.sflag [#allocation3], %s867
        %s869 = sand.u32 %s71, 1
        %s870 = smul.addr %s869, 8
        %s871 = scalar_lea.vmem [#allocation2], %s870
        // Predicated region
        $region29: #{tpu_custom_call.1} parent=27 // pred_check
          %p872 = pneg %p81
        $region30: #{tpu_custom_call.1} parent=27 // pred_check_branch
          %874 = sbr.rel (%p872) target = $region32
        $region31: #{tpu_custom_call.1} parent=27 // pred_region
          %876 = vsyncadd %s868, 0
          %s877 = smul.addr %s16, 8
          %s878 = scalar_lea.hbm %s2, %s877
          %s880 = sshll.u32 %s871, 4
          %s881 = int_to_ptr.vmem [resolvable:$true] %s880
          %s882 = sshll.u32 %s878, 4
          %s883 = int_to_ptr.hbm [resolvable:$true] %s882
          %885 = dma.vmem_to_hbm [thread:$0]  %s881, 128, %s883, %s868
        $region32: #{tpu_custom_call.1} parent=27 // pred_fallthru
          _
      $region28: #{tpu_custom_call.1} parent=5 // pred_fallthru
        _
      %p886 = scmp.le.s32.totalorder 2, %s11
      // Predicated region
      $region33: #{tpu_custom_call.1} parent=5 // pred_check
        %p887 = pneg %p886
      $region34: #{tpu_custom_call.1} parent=5 // pred_check_branch
        %889 = sbr.rel (%p887) target = $region36
      $region35: #{tpu_custom_call.1} parent=5 // pred_region
        %s890 = ssub.s32 %s11, 2
        // Predicated region
        $region37: #{tpu_custom_call.1} parent=35 // pred_check
          %p891 = pneg %p87
        $region38: #{tpu_custom_call.1} parent=35 // pred_check_branch
          %893 = sbr.rel (%p891) target = $region40
        $region39: #{tpu_custom_call.1} parent=35 // pred_region
          %s894 = sand.u32 %s72, 1
          %s895 = scalar_lea.sflag [#allocation3], %s894
          %s896 = sand.u32 %s72, 1
          %s897 = smul.addr %s896, 8
          %s898 = scalar_lea.vmem [#allocation2], %s897
          %900 = dma.done %s895, 128
        $region40: #{tpu_custom_call.1} parent=35 // pred_fallthru
          _
      $region36: #{tpu_custom_call.1} parent=5 // pred_fallthru
        _
    $region6: #{tpu_custom_call.1} parent=1 // loop_footer
      %s15 = sadd.s32 1, %s11
    $region7: #{tpu_custom_call.1} parent=1 // loop_footer_branch
      %10 = sbr.rel target = $region3
    $region8: #{tpu_custom_call.1} parent=1 // loop_exit
      _
    %901 = vsyncpa [#allocation3], 1
    %s902 = scalar_lea.sflag [#allocation3], 1
    %903 = vsyncpa %s902, 1

</llo_original>
